<compile_context>
chip_gen: v6e
topology: v6e:2x2x1
jax: 0.10.0
libtpu: 0.0.40
codegen_flags: <defaults>
</compile_context>

<pallas_src>
import jax
import jax.numpy as jnp
from jax import lax
from jax.experimental import pallas as pl
from jax.experimental.pallas import tpu as pltpu


def _cdiv(a: int, b: int) -> int:
    return -(-a // b)


def _round_up(x: int, m: int) -> int:
    return _cdiv(x, m) * m


def _vmem_capacity_bytes() -> int:
    """Physical VMEM per TensorCore; conservative (v7x-sized) fallback."""
    try:
        cap = getattr(pltpu.get_tpu_info(), "vmem_capacity_bytes", None)
        if cap:
            return int(cap)
    except Exception:
        pass
    return 64 << 20


_PARALLEL_TILES = (512, 256, 128)


def _pick_parallel_tile(dim: int) -> int:
    # Small dims: one full-extent block (always a legal block shape, zero padding).
    if dim <= _PARALLEL_TILES[0]:
        return dim
    # Otherwise the largest aligned tile that minimizes rounded-up MXU work.
    best_t, best_cover = _PARALLEL_TILES[-1], None
    for t in _PARALLEL_TILES:
        cover = _cdiv(dim, t) * t
        if best_cover is None or cover < best_cover:
            best_t, best_cover = t, cover
    return best_t


def _footprint(tm, tn, tk, in_isz, w_isz, out_isz, *, w_bufs=2, with_acc=False):
    f = 2 * tm * tk * in_isz + w_bufs * tn * tk * w_isz + 2 * tm * tn * out_isz
    if with_acc:
        f += tm * tn * 4
    return f


def _contract(x_t, w_t, compute_dtype):
    # x_t: (tm, tk), w_t: (tn, tk) -> (tm, tn); contraction on dim 1 of both
    # operands so no transposed weight tile is ever materialized.
    if compute_dtype is not None:
        x_t = x_t.astype(compute_dtype)
        w_t = w_t.astype(compute_dtype)
    return lax.dot_general(
        x_t, w_t,
        dimension_numbers=(((1,), (1,)), ((), ())),
        preferred_element_type=jnp.float32,
    )


# ---------------- single-pass kernels (K-resident, 2D grid) ----------------

def _make_single_pass_kernel(has_bias, compute_dtype):
    if has_bias:
        def kernel(x_ref, w_ref, b_ref, o_ref):
            acc = _contract(x_ref[...], w_ref[...], compute_dtype)
            o_ref[...] = (acc + b_ref[...]).astype(o_ref.dtype)
    else:
        def kernel(x_ref, w_ref, o_ref):
            o_ref[...] = _contract(
                x_ref[...], w_ref[...], compute_dtype).astype(o_ref.dtype)
    return kernel


# ------------- multi-pass kernels (K reduction axis, f32 acc) --------------

def _make_multi_pass_kernel(has_bias, compute_dtype, K, tk, mask_tail):
    def step(x_ref, w_ref, b_ref, o_ref, acc_ref):
        k = pl.program_id(2)

        @pl.when(k == 0)
        def _():
            acc_ref[...] = jnp.zeros_like(acc_ref)

        x_t = x_ref[...]
        w_t = w_ref[...]
        if mask_tail:
            # The last K block hangs off the array edge; Pallas only DMAs the
            # in-bounds columns and the rest of the VMEM tile is stale data.
            # Zero both tails before the MXU (0 * garbage could be NaN).
            rem = K - k * tk
            x_t = jnp.where(
                lax.broadcasted_iota(jnp.int32, x_t.shape, 1) < rem, x_t, 0)
            w_t = jnp.where(
                lax.broadcasted_iota(jnp.int32, w_t.shape, 1) < rem, w_t, 0)

        acc_ref[...] += _contract(x_t, w_t, compute_dtype)

        @pl.when(k == pl.num_programs(2) - 1)
        def _():
            if has_bias:
                o_ref[...] = (acc_ref[...] + b_ref[...]).astype(o_ref.dtype)
            else:
                o_ref[...] = acc_ref[...].astype(o_ref.dtype)

    if has_bias:
        def kernel(x_ref, w_ref, b_ref, o_ref, acc_ref):
            step(x_ref, w_ref, b_ref, o_ref, acc_ref)
    else:
        def kernel(x_ref, w_ref, o_ref, acc_ref):
            step(x_ref, w_ref, None, o_ref, acc_ref)
    return kernel


# -------------------------------- wrapper -----------------------------------

def row_parallel_linear(x, weight, bias=None, *, compute_dtype=None,
                        multipass_tk=None):
    """y = x @ weight.T + bias, matching RowParallelLinear.forward (tp_size=1).

    compute_dtype: optionally cast tiles in-kernel (e.g. jnp.bfloat16) for the
      fast MXU path; accumulation and bias stay f32, output keeps x's dtype.
      For maximum benefit store the weight persistently in that dtype -- this
      wrapper never copies or casts the weight in HBM.
    multipass_tk: force the K-blocked reduction path with this K tile
      (testing / tuning hook).
    """
    *lead, K = x.shape
    N, Kw = weight.shape
    assert K == Kw, (K, Kw)

    out_dtype = x.dtype
    x2d = x.reshape(-1, K)
    M = x2d.shape[0]

    in_isz = jnp.dtype(x2d.dtype).itemsize
    w_isz = jnp.dtype(weight.dtype).itemsize
    out_isz = jnp.dtype(out_dtype).itemsize

    # ---- device-aware VMEM budget (v5e/v6e: 96 MiB scoped; v7x: 48 MiB) ----
    vmem_limit = max(32 << 20, min(_vmem_capacity_bytes() * 3 // 4, 100 << 20))
    budget = vmem_limit - (8 << 20)      # headroom for pipeline bookkeeping

    # ---- parallel (M, N) tiles ----
    tm = _pick_parallel_tile(M)
    tn = _pick_parallel_tile(N)
    # v7x shards "parallel" grid axes over 2 TensorCores: ensure >= 2 blocks.
    # Splitting N keeps total weight traffic unchanged (each block streams
    # half the weight), so it is harmless on single-core chips too.
    if _cdiv(M, tm) * _cdiv(N, tn) == 1 and N >= 256:
        tn = _round_up(_cdiv(N, 2), 128)

    # ---- K strategy: K-resident single pass vs blocked reduction ----
    if multipass_tk is not None:
        single_pass, tk = False, int(multipass_tk)
    else:
        single_pass = _footprint(tm, tn, K, in_isz, w_isz, out_isz) <= budget
        tk = K
        if not single_pass:
            tk = None
            for cand in (2048, 1024, 512, 256):
                if _footprint(tm, tn, cand, in_isz, w_isz, out_isz,
                              with_acc=True) <= budget:
                    tk = cand
                    break
            if tk is None:                 # extreme fallback: shrink tiles
                tm = 128 if M > 128 else tm
                tn = 128 if N > 128 else tn
                tk = 256

    mask_tail = (not single_pass) and (K % tk != 0)

    m_blk, n_blk = _cdiv(M, tm), _cdiv(N, tn)
    k_blk = 1 if single_pass else _cdiv(K, tk)

    # Deeper buffering on the streamed weight for the bandwidth-bound small-M
    # regime (hides DMA latency jitter), only when VMEM allows.
    w_bufs = 2
    if M <= 128 and n_blk * k_blk >= 3 and _footprint(
            tm, tn, tk, in_isz, w_isz, out_isz,
            w_bufs=3, with_acc=not single_pass) <= budget:
        w_bufs = 3

    has_bias = bias is not None
    if has_bias:
        b2d = bias.reshape(1, N).astype(jnp.float32)   # tiny; kept f32

    # ---- grid / specs ----
    if single_pass:
        grid = (m_blk, n_blk)
        x_spec = pl.BlockSpec((tm, tk), lambda i, j: (i, 0))
        w_map = lambda i, j: (j, 0)
        b_spec = pl.BlockSpec((1, tn), lambda i, j: (0, j))
        o_spec = pl.BlockSpec((tm, tn), lambda i, j: (i, j))
        scratch = []
        dim_sem = ("parallel", "parallel")
        kernel = _make_single_pass_kernel(has_bias, compute_dtype)
    else:
        grid = (m_blk, n_blk, k_blk)
        x_spec = pl.BlockSpec((tm, tk), lambda i, j, k: (i, k))
        w_map = lambda i, j, k: (j, k)
        b_spec = pl.BlockSpec((1, tn), lambda i, j, k: (0, j))
        o_spec = pl.BlockSpec((tm, tn), lambda i, j, k: (i, j))
        scratch = [pltpu.VMEM((tm, tn), jnp.float32)]
        dim_sem = ("parallel", "parallel", "arbitrary")
        kernel = _make_multi_pass_kernel(has_bias, compute_dtype, K, tk, mask_tail)

    w_spec = pl.BlockSpec((tn, tk), w_map)
    if w_bufs > 2:
        try:
            w_spec = pl.BlockSpec((tn, tk), w_map,
                                  pipeline_mode=pl.Buffered(w_bufs))
        except (TypeError, AttributeError):
            pass   # older API: fall back to default double buffering

    in_specs = [x_spec, w_spec] + ([b_spec] if has_bias else [])
    args = (x2d, weight) + ((b2d,) if has_bias else ())

    cost = pl.CostEstimate(
        flops=2 * M * N * K,
        transcendentals=0,
        bytes_accessed=(M * K * in_isz + N * K * w_isz + M * N * out_isz
                        + (N * 4 if has_bias else 0)),
    )

    y2d = pl.pallas_call(
        kernel,
        out_shape=jax.ShapeDtypeStruct((M, N), out_dtype),
        grid_spec=pltpu.PrefetchScalarGridSpec(
            num_scalar_prefetch=0,
            grid=grid,
            in_specs=in_specs,
            out_specs=o_spec,
            scratch_shapes=scratch,
        ),
        compiler_params=pltpu.CompilerParams(
            dimension_semantics=dim_sem,
            vmem_limit_bytes=vmem_limit,
        ),
        cost_estimate=cost,
    )(*args)

    return y2d.reshape(*lead, N)


if __name__ == "__main__":
    key = jax.random.PRNGKey(0)

    # --- Config 1: module-like shapes (f32 + bias), K-resident single pass ---
    input_size, output_size = 256, 128   # K, N
    batch, seq = 2, 8                    # M = 16
    k1, k2, k3 = jax.random.split(key, 3)
    x = jax.random.normal(k1, (batch, seq, input_size), dtype=jnp.float32)
    w = jax.random.normal(k2, (output_size, input_size), dtype=jnp.float32) * 0.02
    b = jax.random.normal(k3, (output_size,), dtype=jnp.float32) * 0.01

    y = jax.block_until_ready(row_parallel_linear(x, w, b))
    y_ref = x @ w.T + b
    assert y.shape == (batch, seq, output_size), y.shape
    assert jnp.allclose(y, y_ref, atol=1e-4, rtol=1e-4), "config 1 mismatch"

    # --- Config 2: non-128-multiple K/N, no bias (full-extent blocks, no pad) ---
    k4, k5 = jax.random.split(k3)
    x2 = jax.random.normal(k4, (4, 5, 200), dtype=jnp.float32)          # M=20, K=200
    w2 = jax.random.normal(k5, (96, 200), dtype=jnp.float32) * 0.02     # N=96
    y2 = jax.block_until_ready(row_parallel_linear(x2, w2, None))
    assert y2.shape == (4, 5, 96), y2.shape
    assert jnp.allclose(y2, x2 @ w2.T, atol=1e-4, rtol=1e-4), "config 2 mismatch"

    # --- Config 3: blocked-K reduction path with in-kernel K-tail masking ---
    k6, k7, k8 = jax.random.split(k5, 3)
    x3 = jax.random.normal(k6, (8, 2176), dtype=jnp.float32)
    w3 = jax.random.normal(k7, (128, 2176), dtype=jnp.float32) * 0.02
    b3 = jax.random.normal(k8, (128,), dtype=jnp.float32) * 0.01
    y3 = jax.block_until_ready(row_parallel_linear(x3, w3, b3, multipass_tk=512))
    y3_ref = jnp.dot(x3, w3.T, precision=lax.Precision.HIGHEST) + b3
    assert jnp.allclose(y3, y3_ref, atol=2e-3, rtol=2e-3), "config 3 mismatch"

    # --- Config 4: 1x1 grid split along N (2 parallel blocks, partial edge) ---
    k9, k10, k11 = jax.random.split(k8, 3)
    x4 = jax.random.normal(k9, (2, 8, 256), dtype=jnp.float32)           # M=16
    w4 = jax.random.normal(k10, (384, 256), dtype=jnp.float32) * 0.02    # N=384
    b4 = jax.random.normal(k11, (384,), dtype=jnp.float32) * 0.01
    y4 = jax.block_until_ready(row_parallel_linear(x4, w4, b4))
    assert y4.shape == (2, 8, 384), y4.shape
    assert jnp.allclose(y4, x4 @ w4.T + b4, atol=1e-4, rtol=1e-4), "config 4 mismatch"

    # --- Config 5: bf16 in-kernel compute (no HBM-side weight cast) ---
    y5 = jax.block_until_ready(
        row_parallel_linear(x, w, b, compute_dtype=jnp.bfloat16))
    assert jnp.allclose(y5, y_ref, atol=2e-2, rtol=2e-2), "config 5 mismatch"

    print("KERNEL_OK")
</pallas_src>

<mosaic_0001>
module attributes {stable_mosaic.version = 11 : i64} {
  func.func @kernel(%arg0: i32, %arg1: i32, %arg2: memref<16x256xf32, #tpu.memory_space<vmem>>, %arg3: memref<128x256xf32, #tpu.memory_space<vmem>>, %arg4: memref<1x128xf32, #tpu.memory_space<vmem>>, %arg5: memref<16x128xf32, #tpu.memory_space<vmem>>) attributes {dimension_semantics = [#tpu.dimension_semantics<parallel>, #tpu.dimension_semantics<parallel>], iteration_bounds = array<i64: 1, 1>, scalar_prefetch = 0 : i64, scratch_operands = 0 : i64, tpu.core_type = #tpu.core_type<tc>, window_params = [{transform_indices = @transform_0, window_bounds = array<i64: 16, 256>}, {transform_indices = @transform_1, window_bounds = array<i64: 128, 256>}, {transform_indices = @transform_2, window_bounds = array<i64: 1, 128>}, {transform_indices = @transform_3, window_bounds = array<i64: 16, 128>}]} {
    %c0 = arith.constant 0 : index
    %c0_0 = arith.constant 0 : index
    %0 = vector.load %arg2[%c0, %c0_0] : memref<16x256xf32, #tpu.memory_space<vmem>>, vector<16x256xf32>
    %c0_1 = arith.constant 0 : index
    %c0_2 = arith.constant 0 : index
    %1 = vector.load %arg3[%c0_1, %c0_2] : memref<128x256xf32, #tpu.memory_space<vmem>>, vector<128x256xf32>
    %cst = arith.constant dense<0.000000e+00> : vector<16x128xf32>
    %2 = tpu.matmul %0, %1, %cst {dimension_numbers = #tpu.dot_dimension_numbers<[1], [1], [0], [0], [0, 0, 1, 0], [], []>} : vector<16x256xf32>, vector<128x256xf32>, vector<16x128xf32> -> vector<16x128xf32>
    %c0_3 = arith.constant 0 : index
    %c0_4 = arith.constant 0 : index
    %3 = vector.load %arg4[%c0_3, %c0_4] : memref<1x128xf32, #tpu.memory_space<vmem>>, vector<1x128xf32>
    %4 = vector.broadcast %3 : vector<1x128xf32> to vector<16x128xf32>
    %5 = arith.addf %2, %4 : vector<16x128xf32>
    %c0_5 = arith.constant 0 : index
    %c0_6 = arith.constant 0 : index
    %6 = vector.load %arg5[%c0_5, %c0_6] : memref<16x128xf32, #tpu.memory_space<vmem>>, vector<16x128xf32>
    tpu.vector_store %arg5[%c0_5, %c0_6], %5 {strides = array<i32>} : memref<16x128xf32, #tpu.memory_space<vmem>>, vector<16x128xf32>,
    return
  }
  func.func @transform_0(%arg0: i32, %arg1: i32) -> (i32, i32) {
    %c0_i32 = arith.constant 0 : i32
    %c0_i32_0 = arith.constant 0 : i32
    return %arg0, %c0_i32 : i32, i32
  }
  func.func @transform_1(%arg0: i32, %arg1: i32) -> (i32, i32) {
    %c0_i32 = arith.constant 0 : i32
    %c0_i32_0 = arith.constant 0 : i32
    return %arg1, %c0_i32 : i32, i32
  }
  func.func @transform_2(%arg0: i32, %arg1: i32) -> (i32, i32) {
    %c0_i32 = arith.constant 0 : i32
    %c0_i32_0 = arith.constant 0 : i32
    return %c0_i32, %arg1 : i32, i32
  }
  func.func @transform_3(%arg0: i32, %arg1: i32) -> (i32, i32) {
    %c0_i32 = arith.constant 0 : i32
    return %arg0, %arg1 : i32, i32
  }
}

</mosaic_0001>

<llo_original>
// kernel: tpu_custom_call.1
$region0: #{tpu_custom_call.1}
  #allocation0 [shape = 'u32[]', space=smem, size = 0x4, offset = 0x4, fixed_abs, tag = 'smem constant byte address 0x4 - core index']
  #allocation1 [shape = 'u32[144,128]{1,0:T(1,128)}', space=vmem, size = 0x12000, scoped, tag = 'internal scratch']
  %s0 = inlined_call_operand.hbm [shape: f32[16,256], index: 0, kind: input, shape index: {}]
  %s1 = inlined_call_operand.hbm [shape: f32[128,256], index: 1, kind: input, shape index: {}]
  %s2 = inlined_call_operand.vmem [shape: f32[1,128], index: 2, kind: input, shape index: {}]
  %s3 = inlined_call_operand.hbm [shape: f32[16,128], index: 3, kind: output, shape index: {}]
  %s4 = sld [smem:[#allocation0]]
  $region30: #{tpu_custom_call.1} parent=0
    _
  %s6 = ssub.s32 1, %s4
  %s7 = scalar_select 0, %s6, %s4
  $region1: #{tpu_custom_call.1} parent=0
    #allocation2 [shape = 'u8[16384]{0}', space=vmem, size = 0x4000, scoped, tag = 'input window, operand 0, single buffered']
    #allocation3 [shape = 's32[1]{0}', space=sflag, size = 0x4, scoped, tag = 'scoped memory for tpu_custom_call.1']
    #allocation4 [shape = 's32[1]{0}', space=sflag, size = 0x4, scoped, tag = 'scoped memory for tpu_custom_call.1']
    #allocation5 [shape = 'u8[131072]{0}', space=vmem, size = 0x20000, scoped, tag = 'input window, operand 1, single buffered']
    #allocation6 [shape = 's32[1]{0}', space=sflag, size = 0x4, scoped, tag = 'scoped memory for tpu_custom_call.1']
    #allocation7 [shape = 'u8[8192]{0}', space=vmem, size = 0x2000, scoped, tag = 'output window, operand 0, single buffered']
    %8 = vsyncpa [#allocation3], 0
    %9 = vsyncpa [#allocation6], 0
    %10 = vsyncpa [#allocation4], 0
    // Predicated region
    $region2: #{tpu_custom_call.1} parent=1 // pred_check
      _
    $region3: #{tpu_custom_call.1} parent=1 // pred_check_branch
      %12 = sbr.rel (0) target = $region5
    $region4: #{tpu_custom_call.1} parent=1 // pred_region
      %s14 = ssub.s32 512, 512
      %15 = vsyncadd [#allocation3], %s14
      %s16 = sshll.u32 [#allocation2], 4
      %s17 = int_to_ptr.vmem [resolvable:$true] %s16
      %22 = dma.hbm_to_vmem [thread:$0]  %s0, 512, %s17, [#allocation3], 256, 256, 16
    $region5: #{tpu_custom_call.1} parent=1 // pred_fallthru
      _
    // Predicated region
    $region6: #{tpu_custom_call.1} parent=1 // pred_check
      _
    $region7: #{tpu_custom_call.1} parent=1 // pred_check_branch
      %24 = sbr.rel (0) target = $region9
    $region8: #{tpu_custom_call.1} parent=1 // pred_region
      %s26 = ssub.s32 4096, 4096
      %27 = vsyncadd [#allocation6], %s26
      %s28 = sshll.u32 [#allocation5], 4
      %s29 = int_to_ptr.vmem [resolvable:$true] %s28
      %34 = dma.hbm_to_vmem [thread:$0]  %s1, 4096, %s29, [#allocation6], 256, 256, 16
    $region9: #{tpu_custom_call.1} parent=1 // pred_fallthru
      _
    // Predicated region
    $region10: #{tpu_custom_call.1} parent=1 // pred_check
      _
    $region11: #{tpu_custom_call.1} parent=1 // pred_check_branch
      %36 = sbr.rel (0) target = $region13
    $region12: #{tpu_custom_call.1} parent=1 // pred_region
      _
    $region13: #{tpu_custom_call.1} parent=1 // pred_fallthru
      _
    // Predicated region
    $region14: #{tpu_custom_call.1} parent=1 // pred_check
      _
    $region15: #{tpu_custom_call.1} parent=1 // pred_check_branch
      %38 = sbr.rel (0) target = $region17
    $region16: #{tpu_custom_call.1} parent=1 // pred_region
      %39 = dma.done [#allocation3], 512
    $region17: #{tpu_custom_call.1} parent=1 // pred_fallthru
      _
    // Predicated region
    $region18: #{tpu_custom_call.1} parent=1 // pred_check
      _
    $region19: #{tpu_custom_call.1} parent=1 // pred_check_branch
      %41 = sbr.rel (0) target = $region21
    $region20: #{tpu_custom_call.1} parent=1 // pred_region
      %42 = dma.done [#allocation6], 4096
    $region21: #{tpu_custom_call.1} parent=1 // pred_fallthru
      _
    %v43 = vld [vmem:[#allocation2] sm:$0xff]
    %v44 = vld [vmem:[#allocation2 + $0x8] sm:$0xff]
    %v45 = vld [vmem:[#allocation2 + $0x10] sm:$0xff]
    %v46 = vld [vmem:[#allocation2 + $0x18] sm:$0xff]
    %v47 = vld [vmem:[#allocation5] sm:$0xff]
    %v48 = vld [vmem:[#allocation5 + $0x8] sm:$0xff]
    %v49 = vld [vmem:[#allocation5 + $0x10] sm:$0xff]
    %v50 = vld [vmem:[#allocation5 + $0x18] sm:$0xff]
    %v51 = vld [vmem:[#allocation5 + $0x20] sm:$0xff]
    %v52 = vld [vmem:[#allocation5 + $0x28] sm:$0xff]
    %v53 = vld [vmem:[#allocation5 + $0x30] sm:$0xff]
    %v54 = vld [vmem:[#allocation5 + $0x38] sm:$0xff]
    %v55 = vld [vmem:[#allocation5 + $0x40] sm:$0xff]
    %v56 = vld [vmem:[#allocation5 + $0x48] sm:$0xff]
    %v57 = vld [vmem:[#allocation5 + $0x50] sm:$0xff]
    %v58 = vld [vmem:[#allocation5 + $0x58] sm:$0xff]
    %v59 = vld [vmem:[#allocation5 + $0x60] sm:$0xff]
    %v60 = vld [vmem:[#allocation5 + $0x68] sm:$0xff]
    %v61 = vld [vmem:[#allocation5 + $0x70] sm:$0xff]
    %v62 = vld [vmem:[#allocation5 + $0x78] sm:$0xff]
    %v63 = vld [vmem:[#allocation5 + $0x80] sm:$0xff]
    %v64 = vld [vmem:[#allocation5 + $0x88] sm:$0xff]
    %v65 = vld [vmem:[#allocation5 + $0x90] sm:$0xff]
    %v66 = vld [vmem:[#allocation5 + $0x98] sm:$0xff]
    %v67 = vld [vmem:[#allocation5 + $0xa0] sm:$0xff]
    %v68 = vld [vmem:[#allocation5 + $0xa8] sm:$0xff]
    %v69 = vld [vmem:[#allocation5 + $0xb0] sm:$0xff]
    %v70 = vld [vmem:[#allocation5 + $0xb8] sm:$0xff]
    %v71 = vld [vmem:[#allocation5 + $0xc0] sm:$0xff]
    %v72 = vld [vmem:[#allocation5 + $0xc8] sm:$0xff]
    %v73 = vld [vmem:[#allocation5 + $0xd0] sm:$0xff]
    %v74 = vld [vmem:[#allocation5 + $0xd8] sm:$0xff]
    %v75 = vld [vmem:[#allocation5 + $0xe0] sm:$0xff]
    %v76 = vld [vmem:[#allocation5 + $0xe8] sm:$0xff]
    %v77 = vld [vmem:[#allocation5 + $0xf0] sm:$0xff]
    %v78 = vld [vmem:[#allocation5 + $0xf8] sm:$0xff]
    %v79 = vld [vmem:[%s2] sm:$0x1]
    %v81 = vlaneseq
    %v82 = vshrl.u32 %v81, 7
    %v83 = vsub.s32 0, %v82
    %v84 = vrot.slane %v79, %v83
    %86 = vmatprep.subr.mxu0 %v78
    %87 = vmatpush1.xpose.msra.mxu0 %v77
    %88 = vmatprep.subr.mxu0 %v76
    %89 = vmatpush1.xpose.msra.mxu0 %v75
    %90 = vmatprep.subr.mxu0 %v74
    %91 = vmatpush1.xpose.msra.mxu0 %v73
    %92 = vmatprep.subr.mxu0 %v72
    %93 = vmatpush1.xpose.msra.mxu0 %v71
    %94 = vmatprep.subr.mxu0 %v70
    %95 = vmatpush1.xpose.msra.mxu0 %v69
    %96 = vmatprep.subr.mxu0 %v68
    %97 = vmatpush1.xpose.msra.mxu0 %v67
    %98 = vmatprep.subr.mxu0 %v66
    %99 = vmatpush1.xpose.msra.mxu0 %v65
    %100 = vmatprep.subr.mxu0 %v64
    %101 = vmatpush1.xpose.msra.mxu0 %v63
    %102 = vmatprep.subr.mxu0 %v62
    %103 = vmatpush1.xpose.msra.mxu0 %v61
    %104 = vmatprep.subr.mxu0 %v60
    %105 = vmatpush1.xpose.msra.mxu0 %v59
    %106 = vmatprep.subr.mxu0 %v58
    %107 = vmatpush1.xpose.msra.mxu0 %v57
    %108 = vmatprep.subr.mxu0 %v56
    %109 = vmatpush1.xpose.msra.mxu0 %v55
    %110 = vmatprep.subr.mxu0 %v54
    %111 = vmatpush1.xpose.msra.mxu0 %v53
    %112 = vmatprep.subr.mxu0 %v52
    %113 = vmatpush1.xpose.msra.mxu0 %v51
    %114 = vmatprep.subr.mxu0 %v50
    %115 = vmatpush1.xpose.msra.mxu0 %v49
    %116 = vmatprep.subr.mxu0 %v48
    %117 = vmatpush1.xpose.msra.mxu0 %v47
    %118 = vmatprep.subr.mxu0 0.0
    %119 = vmatpush2.xpose.msra.mxu0 0.0
    %120 = vmatprep.subr.mxu0 0.0
    %121 = vmatpush2.xpose.msra.mxu0 0.0
    %122 = vmatprep.subr.mxu0 0.0
    %123 = vmatpush2.xpose.msra.mxu0 0.0
    %124 = vmatprep.subr.mxu0 0.0
    %125 = vmatpush2.xpose.msra.mxu0 0.0
    %126 = vmatprep.subr.mxu0 0.0
    %127 = vmatpush2.xpose.msra.mxu0 0.0
    %128 = vmatprep.subr.mxu0 0.0
    %129 = vmatpush2.xpose.msra.mxu0 0.0
    %130 = vmatprep.subr.mxu0 0.0
    %131 = vmatpush2.xpose.msra.mxu0 0.0
    %132 = vmatprep.subr.mxu0 0.0
    %133 = vmatpush2.xpose.msra.mxu0 0.0
    %134 = vmatprep.subr.mxu0 0.0
    %135 = vmatpush2.xpose.msra.mxu0 0.0
    %136 = vmatprep.subr.mxu0 0.0
    %137 = vmatpush2.xpose.msra.mxu0 0.0
    %138 = vmatprep.subr.mxu0 0.0
    %139 = vmatpush2.xpose.msra.mxu0 0.0
    %140 = vmatprep.subr.mxu0 0.0
    %141 = vmatpush2.xpose.msra.mxu0 0.0
    %142 = vmatprep.subr.mxu0 0.0
    %143 = vmatpush2.xpose.msra.mxu0 0.0
    %144 = vmatprep.subr.mxu0 0.0
    %145 = vmatpush2.xpose.msra.mxu0 0.0
    %146 = vmatprep.subr.mxu0 0.0
    %147 = vmatpush2.xpose.msra.mxu0 0.0
    %148 = vmatprep.subr.mxu0 0.0
    %149 = vmatpush2.xpose.msra.mxu0 0.0
    %150 = vmatprep.mubr.f32.mxu0 %v44
    %151 = vmatmul.mubr.f32.gmra.mxu0 %v43
    %v152 = vpop.f32.mrf.mxu0
    %v153 = vadd.f32 %v84, %v152
    %v154 = vpop.f32.mrf.mxu0
    %155 = vmatprep.mubr.f32.mxu0 %v46
    %156 = vmatmul.mubr.f32.gmra.mxu0 %v45
    %v157 = vpop.f32.mrf.mxu0
    %v158 = vadd.f32 %v84, %v157
    %v159 = vpop.f32.mrf.mxu0
    %160 = vdwg.mxu0
    %161 = vst [vmem:[#allocation7] sm:$0xff] %v153
    %162 = vst [vmem:[#allocation7 + $0x8] sm:$0xff] %v158
    // Predicated region
    $region22: #{tpu_custom_call.1} parent=1 // pred_check
      _
    $region23: #{tpu_custom_call.1} parent=1 // pred_check_branch
      %164 = sbr.rel (0) target = $region25
    $region24: #{tpu_custom_call.1} parent=1 // pred_region
      %s166 = ssub.s32 256, 256
      %167 = vsyncadd [#allocation4], %s166
      %s168 = sshll.u32 [#allocation7], 4
      %s169 = int_to_ptr.vmem [resolvable:$true] %s168
      %174 = dma.vmem_to_hbm [thread:$0]  %s169, 256, %s3, [#allocation4], 128, 128, 8
    $region25: #{tpu_custom_call.1} parent=1 // pred_fallthru
      _
    // Predicated region
    $region26: #{tpu_custom_call.1} parent=1 // pred_check
      _
    $region27: #{tpu_custom_call.1} parent=1 // pred_check_branch
      %176 = sbr.rel (0) target = $region29
    $region28: #{tpu_custom_call.1} parent=1 // pred_region
      %177 = dma.done [#allocation4], 256
    $region29: #{tpu_custom_call.1} parent=1 // pred_fallthru
      _
    %178 = vsyncpa [#allocation3], 1
    %179 = vsyncpa [#allocation6], 1
    %180 = vsyncpa [#allocation4], 1

</llo_original>
